<compile_context>
chip_gen: v6e
topology: v6e:2x2x1
jax: 0.10.0
libtpu: 0.0.40
codegen_flags: <defaults>
</compile_context>

<pallas_src>
import functools

import jax
import jax.numpy as jnp
from jax import lax
from jax.experimental import pallas as pl
from jax.experimental.pallas import tpu as pltpu

MIN_EXPERT_CAPACITY = 4
_META_LANES = 8   # per-row metadata: [g1, flat1, g2*sel2, index_2, c2, 0, 0, 0]


def _pick_chunk(n, target):
  """Largest group-dim tile <= target that divides n and is a multiple of 8 (or n)."""
  if n <= target:
    return n
  for c in range(min(target, n), 7, -1):
    if n % c == 0 and c % 8 == 0:
      return c
  # TODO(synk): mask the ragged tail in-kernel instead of this single-chunk fallback.
  return n


# ----------------------------- pass 1: routing --------------------------------

def _routing_kernel(x_ref, w_ref, probs_ref, tri_ref,        # inputs
                    meta_ref, stats_ref,                      # outputs
                    carry_ref,                                # VMEM scratch (1, 2e)
                    *, num_gates, expert_capacity, inv_threshold, eps):
  f32 = jnp.float32
  e = num_gates
  cap_f = float(expert_capacity)
  j = pl.program_id(1)

  @pl.when(j == 0)
  def _init():
    carry_ref[...] = jnp.zeros_like(carry_ref)
    stats_ref[...] = jnp.zeros_like(stats_ref)

  x = x_ref[0]            # (chunk, d)
  w = w_ref[...]          # (d, e)          (grid-invariant)
  probs = probs_ref[0]    # (chunk, 1)
  tri = tri_ref[...]      # (chunk, chunk)  bf16 strictly-lower-triangular (invariant)

  chunk = x.shape[0]

  # raw gates: softmax(x @ w).  f32 matmul for router-precision parity.
  logits = jnp.dot(x, w, preferred_element_type=f32)
  logits = logits - jnp.max(logits, axis=-1, keepdims=True)
  expl = jnp.exp(logits)
  raw = expl * pl.reciprocal(jnp.sum(expl, axis=-1, keepdims=True), approx=True)

  e_ids = lax.broadcasted_iota(jnp.int32, (1, e), 1)   # 1-row iota, broadcast below

  # top-1
  gate_1 = jnp.max(raw, axis=-1, keepdims=True)
  index_1 = jnp.min(jnp.where(raw == gate_1, e_ids, e), axis=-1, keepdims=True)
  mask_1 = (e_ids == index_1).astype(f32)               # (chunk, e)

  # top-2 = top-1 of the remaining gates
  raw_wo1 = raw * (1.0 - mask_1)
  gate_2 = jnp.max(raw_wo1, axis=-1, keepdims=True)
  index_2 = jnp.min(jnp.where(raw_wo1 == gate_2, e_ids, e), axis=-1, keepdims=True)
  mask_2 = (e_ids == index_2).astype(f32)

  # exact divide for the gate normalization (review: approx recip only in the softmax)
  denom = gate_1 + gate_2 + eps
  gate_1n = gate_1 / denom
  gate_2n = gate_2 / denom

  # loss statistics (pre-capacity mask_1 and raw gates), accumulated per batch.
  stats_ref[0] += jnp.concatenate(
      [jnp.sum(mask_1, axis=0, keepdims=True),
       jnp.sum(raw, axis=0, keepdims=True)], axis=-1)          # (1, 2e)

  # second-expert policy == 'random'
  sel2 = (probs < gate_2n * inv_threshold).astype(f32)         # (chunk, 1)
  mask_2 = mask_2 * sel2

  # fused blocked exclusive cumsum over the group dim for both masks.  bf16 x bf16
  # of {0,1} with f32 accumulation is exact; per-expert running counts carried in
  # VMEM scratch across chunks (reset at j == 0).
  m = jnp.concatenate([mask_1, mask_2], axis=-1)               # (chunk, 2e)
  pos = jnp.dot(tri, m.astype(jnp.bfloat16),
                preferred_element_type=f32) + carry_ref[...]   # (chunk, 2e)
  carry_ref[...] += jnp.sum(m, axis=0, keepdims=True)

  # expert-1 capacity check (prefix-only -> exact within the streaming pass)
  pos1 = pos[:, :e] * mask_1
  mask_1 = mask_1 * (pos1 < cap_f).astype(f32)
  mask_1_flat = jnp.sum(mask_1, axis=-1, keepdims=True)        # (chunk, 1) in {0,1}
  pos1_s = jnp.sum(pos1, axis=-1, keepdims=True)
  g1c = gate_1n * mask_1_flat

  # flat slot for expert 1; -1 for dropped rows so the emit pass never aliases.
  flat1 = jnp.where(mask_1_flat > 0.0,
                    index_1.astype(f32) * cap_f + pos1_s, -1.0)

  # expert-2 prefix count within the group; the full-group mask_1_count offset and
  # the capacity check are applied in the emit pass.
  c2 = jnp.sum(pos[:, e:] * mask_2, axis=-1, keepdims=True)
  g2s = gate_2n * sel2

  lane = lax.broadcasted_iota(jnp.int32, (1, _META_LANES), 1)
  meta = jnp.where(lane == 0, g1c,
           jnp.where(lane == 1, flat1,
             jnp.where(lane == 2, g2s,
               jnp.where(lane == 3, index_2.astype(f32),
                 jnp.where(lane == 4, c2, 0.0)))))             # (chunk, 8)
  meta_ref[0] = meta


# --------------------------- pass 2: emit combine ------------------------------

def _emit_kernel(meta_ref, m1cnt_ref, combine_ref,
                 *, num_gates, expert_capacity, ec_pad):
  e = num_gates
  cap = expert_capacity
  cap_f = float(cap)

  meta = meta_ref[0]                  # (chunk2, 8)
  m1cnt = m1cnt_ref[0]                # (1, e)  == min(full-group count_1, capacity)

  g1c = meta[:, 0:1]
  flat1 = meta[:, 1:2].astype(jnp.int32)
  g2s = meta[:, 2:3]
  idx2 = meta[:, 3:4].astype(jnp.int32)
  c2 = meta[:, 4:5]

  # gather mask_1_count at each row's second expert (tiny one-hot select over e)
  e_ids = lax.broadcasted_iota(jnp.int32, (1, e), 1)
  off2 = jnp.sum(jnp.where(e_ids == idx2, m1cnt, 0.0), axis=-1, keepdims=True)
  pos2 = c2 + off2
  valid2 = jnp.logical_and(g2s > 0.0, pos2 < cap_f)
  g2c = jnp.where(valid2, g2s, 0.0)
  flat2 = jnp.where(valid2, idx2 * cap + pos2.astype(jnp.int32), -1)

  # combine over the flattened (expert, capacity) axis: 1-row iota + one fused
  # nested select.  Invalid rows have flat index -1 -> no aliasing possible.
  slot_ids = lax.broadcasted_iota(jnp.int32, (1, ec_pad), 1)
  combine = jnp.where(slot_ids == flat1, g1c,
                      jnp.where(slot_ids == flat2, g2c, 0.0))  # (chunk2, ec_pad)
  combine_ref[0] = combine.astype(combine_ref.dtype)           # bf16 store


# ----------------------------------- wrapper -----------------------------------

def top2_gating(x, w_gating, probs, *,
                capacity_factor=1.25, second_threshold=0.2, eps=1e-9):
  """Pallas implementation of Top2Gating.forward (training defaults, importance=None)."""
  b, n, d = x.shape
  e = w_gating.shape[-1]

  expert_capacity = min(n, int(n * capacity_factor / e))
  expert_capacity = max(expert_capacity, MIN_EXPERT_CAPACITY)
  ec = e * expert_capacity
  # lane-dense output slab only when it is big enough to matter; no pad (and no wasted
  # store bytes) when e*cap <= 128.
  ec_pad = ec if ec <= 128 else ((ec + 127) // 128) * 128

  chunk1 = _pick_chunk(n, 256)
  # emit-pass tile: keep the (chunk2, ec_pad) store block + temps to a few MiB.
  row_bytes = 12 * ec_pad + 64
  target2 = min(256, max(8, (8 * 2**20) // row_bytes))
  chunk2 = _pick_chunk(n, (target2 // 8) * 8)

  # grid-invariant strictly-lower-triangular bf16 tile for the blocked cumsum
  tri = jnp.tril(jnp.ones((chunk1, chunk1), jnp.float32), k=-1).astype(jnp.bfloat16)

  # VMEM budget: chunked working sets, capped at ~3/4 of this chip's physical VMEM.
  try:
    vmem_cap = int(pltpu.get_tpu_info().vmem_capacity_bytes)
  except Exception:
    vmem_cap = 64 * 2**20
  est = max(
      2 * chunk1 * d * 4 + 2 * chunk1 * chunk1 * 2 + 2 * d * e * 4
      + 8 * chunk1 * max(2 * e, _META_LANES) * 4,                      # pass 1
      chunk2 * ec_pad * (2 * 2 + 2 * 4) + 4 * chunk2 * _META_LANES * 4,  # pass 2
  )
  vmem_limit = int(min(vmem_cap * 3 // 4, max(32 * 2**20, 2 * est)))

  routing = functools.partial(
      _routing_kernel, num_gates=e, expert_capacity=expert_capacity,
      inv_threshold=1.0 / max(second_threshold, eps), eps=eps)

  meta, stats = pl.pallas_call(
      routing,
      out_shape=(jax.ShapeDtypeStruct((b, n, _META_LANES), jnp.float32),
                 jax.ShapeDtypeStruct((b, 1, 2 * e), jnp.float32)),
      grid_spec=pltpu.PrefetchScalarGridSpec(
          num_scalar_prefetch=0,
          grid=(b, n // chunk1),
          in_specs=[
              pl.BlockSpec((1, chunk1, d), lambda i, j: (i, j, 0)),
              pl.BlockSpec((d, e), lambda i, j: (0, 0)),            # resident weights
              pl.BlockSpec((1, chunk1, 1), lambda i, j: (i, j, 0)),
              pl.BlockSpec((chunk1, chunk1), lambda i, j: (0, 0)),  # resident tri tile
          ],
          out_specs=[
              pl.BlockSpec((1, chunk1, _META_LANES), lambda i, j: (i, j, 0)),
              pl.BlockSpec((1, 1, 2 * e), lambda i, j: (i, 0, 0)),  # per-batch accum
          ],
          scratch_shapes=[pltpu.VMEM((1, 2 * e), jnp.float32)],     # cumsum carry
      ),
      compiler_params=pltpu.CompilerParams(
          dimension_semantics=("parallel", "arbitrary"),
          vmem_limit_bytes=vmem_limit),
  )(x, w_gating, probs, tri)

  # full-group per-expert expert-1 count after the capacity clip == min(count, cap);
  # needed as the expert-2 position offset in the emit pass.
  m1cnt = jnp.minimum(stats[:, :, :e], float(expert_capacity))        # (b, 1, e)

  emit = functools.partial(_emit_kernel, num_gates=e,
                           expert_capacity=expert_capacity, ec_pad=ec_pad)

  combine_p = pl.pallas_call(
      emit,
      out_shape=jax.ShapeDtypeStruct((b, n, ec_pad), jnp.bfloat16),   # bf16 halves stores
      grid_spec=pltpu.PrefetchScalarGridSpec(
          num_scalar_prefetch=0,
          grid=(b, n // chunk2),
          in_specs=[
              pl.BlockSpec((1, chunk2, _META_LANES), lambda i, j: (i, j, 0)),
              pl.BlockSpec((1, 1, e), lambda i, j: (i, 0, 0)),
          ],
          out_specs=pl.BlockSpec((1, chunk2, ec_pad), lambda i, j: (i, j, 0)),
      ),
      compiler_params=pltpu.CompilerParams(
          dimension_semantics=("parallel", "parallel"),  # both TCs busy even at b == 1
          vmem_limit_bytes=vmem_limit),
  )(meta, m1cnt)

  combine = combine_p[:, :, :ec].astype(jnp.float32).reshape(
      b, n, e, expert_capacity)
  # dispatch is strictly {0,1}; derive it outside the kernel (fuses with consumers).
  dispatch = (combine != 0.0).astype(combine.dtype)

  # loss = mean_{b,e}(density_1 * density_proxy) * e^2, finished from per-batch sums.
  sum_mask1 = stats[:, 0, :e]
  sum_raw = stats[:, 0, e:]
  loss = (jnp.sum(sum_mask1 * sum_raw) * (float(e) / float(b * n * n))).reshape((1,))
  return dispatch, combine, loss


# ------------------------ pure-JAX reference (self-check) ----------------------

def _reference(x, w, probs, *, capacity_factor=1.25, threshold=0.2, eps=1e-9):
  b, n, _ = x.shape
  e = w.shape[-1]
  raw = jax.nn.softmax(jnp.einsum('bnd,de->bne', x, w), axis=-1)
  gate_1 = jnp.max(raw, axis=-1)
  index_1 = jnp.argmax(raw, axis=-1)
  mask_1 = jax.nn.one_hot(index_1, e, dtype=jnp.float32)
  wo1 = raw * (1.0 - mask_1)
  gate_2 = jnp.max(wo1, axis=-1)
  index_2 = jnp.argmax(wo1, axis=-1)
  mask_2 = jax.nn.one_hot(index_2, e, dtype=jnp.float32)
  denom = gate_1 + gate_2 + eps
  gate_1, gate_2 = gate_1 / denom, gate_2 / denom
  loss = jnp.mean(jnp.mean(mask_1, axis=1) * jnp.mean(raw, axis=1)) * float(e * e)
  sel2 = (probs[..., 0] < gate_2 / max(threshold, eps)).astype(jnp.float32)
  mask_2 = mask_2 * sel2[..., None]
  cap = max(MIN_EXPERT_CAPACITY, min(n, int(n * capacity_factor / e)))
  excl = lambda m: jnp.cumsum(m, axis=1) - m
  pos1 = excl(mask_1) * mask_1
  mask_1 = mask_1 * (pos1 < cap)
  m1cnt = jnp.sum(mask_1, axis=1, keepdims=True)
  m1flat = jnp.sum(mask_1, axis=-1)
  pos1 = jnp.sum(pos1, axis=-1)
  gate_1 = gate_1 * m1flat
  pos2 = (excl(mask_2) + m1cnt) * mask_2
  mask_2 = mask_2 * (pos2 < cap)
  m2flat = jnp.sum(mask_2, axis=-1)
  pos2 = jnp.sum(pos2, axis=-1)
  gate_2 = gate_2 * m2flat
  combine = (gate_1[..., None, None] * jax.nn.one_hot(index_1, e)[..., None]
             * jax.nn.one_hot(pos1.astype(jnp.int32), cap)[..., None, :]
             + gate_2[..., None, None] * jax.nn.one_hot(index_2, e)[..., None]
             * jax.nn.one_hot(pos2.astype(jnp.int32), cap)[..., None, :])
  dispatch = (combine != 0.0).astype(combine.dtype)
  return dispatch, combine, loss.reshape((1,))


if __name__ == "__main__":
  key = jax.random.PRNGKey(0)
  kx, kw, kp = jax.random.split(key, 3)

  batch, group_size, dim, num_gates = 2, 8, 32, 4

  x = jax.random.normal(kx, (batch, group_size, dim), dtype=jnp.float32)
  # w_gating ~ torch.randn(dim, num_gates); deterministic synthetic init.
  w_gating = jax.random.normal(kw, (dim, num_gates), dtype=jnp.float32)
  # Uniform noise for the 'random' second-expert policy (torch RNG not reproducible).
  probs = jax.random.uniform(kp, (batch, group_size, 1), dtype=jnp.float32)

  dispatch, combine, loss = top2_gating(x, w_gating, probs)
  jax.block_until_ready((dispatch, combine, loss))

  expert_capacity = max(MIN_EXPERT_CAPACITY,
                        min(group_size, int(group_size * 1.25 / num_gates)))
  assert dispatch.shape == (batch, group_size, num_gates, expert_capacity)
  assert combine.shape == (batch, group_size, num_gates, expert_capacity)
  assert loss.shape == (1,)
  assert bool(jnp.all(jnp.isfinite(combine))) and bool(jnp.isfinite(loss[0]))
  # each token dispatches to at most 2 experts, combine weights in [0, 1]
  assert bool(jnp.all(jnp.sum(dispatch, axis=(2, 3)) <= 2.0))
  assert bool(jnp.all(combine >= 0.0)) and bool(jnp.all(combine <= 1.0 + 1e-5))

  # cross-check against a pure-JAX reference (kernel combine is bf16-rounded)
  d_ref, c_ref, l_ref = _reference(x, w_gating, probs)
  assert bool(jnp.all(dispatch == d_ref))
  assert float(jnp.max(jnp.abs(combine - c_ref))) < 5e-2
  assert abs(float(loss[0]) - float(l_ref[0])) < 1e-2 * max(1.0, abs(float(l_ref[0])))

  print("KERNEL_OK")
</pallas_src>

<mosaic_0001>
module attributes {stable_mosaic.version = 11 : i64} {
  func.func @_routing_kernel(%arg0: i32, %arg1: i32, %arg2: memref<1x8x32xf32, #tpu.memory_space<vmem>>, %arg3: memref<32x4xf32, #tpu.memory_space<vmem>>, %arg4: memref<1x8x1xf32, #tpu.memory_space<vmem>>, %arg5: memref<8x8xbf16, #tpu.memory_space<vmem>>, %arg6: memref<1x8x8xf32, #tpu.memory_space<vmem>>, %arg7: memref<1x1x8xf32, #tpu.memory_space<vmem>>, %arg8: memref<1x8xf32, #tpu.memory_space<vmem>>) attributes {dimension_semantics = [#tpu.dimension_semantics<parallel>, #tpu.dimension_semantics<arbitrary>], iteration_bounds = array<i64: 2, 1>, scalar_prefetch = 0 : i64, scratch_operands = 1 : i64, tpu.core_type = #tpu.core_type<tc>, window_params = [{transform_indices = @transform_0, window_bounds = array<i64: 1, 8, 32>}, {pipeline_mode = #tpu.pipeline_mode<synchronous>, transform_indices = @transform_1, window_bounds = array<i64: 32, 4>}, {transform_indices = @transform_2, window_bounds = array<i64: 1, 8, 1>}, {pipeline_mode = #tpu.pipeline_mode<synchronous>, transform_indices = @transform_3, window_bounds = array<i64: 8, 8>}, {transform_indices = @transform_4, window_bounds = array<i64: 1, 8, 8>}, {transform_indices = @transform_5, window_bounds = array<i64: 1, 1, 8>}]} {
    %c0_i32 = arith.constant 0 : i32
    %0 = arith.cmpi eq, %arg1, %c0_i32 : i32
    %1 = arith.extui %0 : i1 to i32
    %c0_i32_0 = arith.constant 0 : i32
    %2 = arith.cmpi ne, %1, %c0_i32_0 : i32
    scf.if %2 {
      %cst_49 = arith.constant 0.000000e+00 : f32
      %154 = vector.broadcast %cst_49 : f32 to vector<1x8xf32>
      %c0_50 = arith.constant 0 : index
      %c0_51 = arith.constant 0 : index
      %155 = vector.load %arg8[%c0_50, %c0_51] : memref<1x8xf32, #tpu.memory_space<vmem>>, vector<1x8xf32>
      tpu.vector_store %arg8[%c0_50, %c0_51], %154 {strides = array<i32>} : memref<1x8xf32, #tpu.memory_space<vmem>>, vector<1x8xf32>,
      %cst_52 = arith.constant 0.000000e+00 : f32
      %156 = vector.broadcast %cst_52 : f32 to vector<1x1x8xf32>
      %c0_53 = arith.constant 0 : index
      %c0_54 = arith.constant 0 : index
      %c0_55 = arith.constant 0 : index
      %157 = vector.load %arg7[%c0_53, %c0_54, %c0_55] : memref<1x1x8xf32, #tpu.memory_space<vmem>>, vector<1x1x8xf32>
      tpu.vector_store %arg7[%c0_53, %c0_54, %c0_55], %156 {strides = array<i32>} : memref<1x1x8xf32, #tpu.memory_space<vmem>>, vector<1x1x8xf32>,
    } else {
    }
    %c0 = arith.constant 0 : index
    %c0_1 = arith.constant 0 : index
    %c0_2 = arith.constant 0 : index
    %3 = vector.load %arg2[%c0, %c0_1, %c0_2] : memref<1x8x32xf32, #tpu.memory_space<vmem>>, vector<1x8x32xf32>
    %4 = vector.shape_cast %3 : vector<1x8x32xf32> to vector<8x32xf32>
    %c0_3 = arith.constant 0 : index
    %c0_4 = arith.constant 0 : index
    %5 = vector.load %arg3[%c0_3, %c0_4] : memref<32x4xf32, #tpu.memory_space<vmem>>, vector<32x4xf32>
    %c0_5 = arith.constant 0 : index
    %c0_6 = arith.constant 0 : index
    %c0_7 = arith.constant 0 : index
    %6 = vector.load %arg4[%c0_5, %c0_6, %c0_7] : memref<1x8x1xf32, #tpu.memory_space<vmem>>, vector<1x8x1xf32>
    %7 = vector.shape_cast %6 : vector<1x8x1xf32> to vector<8x1xf32>
    %c0_8 = arith.constant 0 : index
    %c0_9 = arith.constant 0 : index
    %8 = vector.load %arg5[%c0_8, %c0_9] : memref<8x8xbf16, #tpu.memory_space<vmem>>, vector<8x8xbf16>
    %cst = arith.constant dense<0.000000e+00> : vector<8x4xf32>
    %9 = tpu.matmul %4, %5, %cst {dimension_numbers = #tpu.dot_dimension_numbers<[1], [0], [0], [1], [0, 0, 1, 1], [], []>} : vector<8x32xf32>, vector<32x4xf32>, vector<8x4xf32> -> vector<8x4xf32>
    %cst_10 = arith.constant dense<0xFF800000> : vector<8xf32>
    %10 = vector.multi_reduction <maximumf>, %9, %cst_10 [1] : vector<8x4xf32> to vector<8xf32>
    %11 = vector.shape_cast %10 : vector<8xf32> to vector<8x1xf32>
    %12 = vector.broadcast %11 : vector<8x1xf32> to vector<8x4xf32>
    %13 = arith.subf %9, %12 : vector<8x4xf32>
    %14 = math.exp %13 : vector<8x4xf32>
    %cst_11 = arith.constant dense<0.000000e+00> : vector<8xf32>
    %15 = vector.multi_reduction <add>, %14, %cst_11 [1] : vector<8x4xf32> to vector<8xf32>
    %16 = vector.shape_cast %15 : vector<8xf32> to vector<8x1xf32>
    %17 = tpu.reciprocal %16 {approx = true} : vector<8x1xf32> -> vector<8x1xf32>
    %18 = vector.broadcast %17 : vector<8x1xf32> to vector<8x4xf32>
    %19 = arith.mulf %14, %18 : vector<8x4xf32>
    %20 = tpu.iota {dimensions = array<i32: 1>} : vector<1x4xi32>
    %cst_12 = arith.constant dense<0xFF800000> : vector<8xf32>
    %21 = vector.multi_reduction <maximumf>, %19, %cst_12 [1] : vector<8x4xf32> to vector<8xf32>
    %22 = vector.shape_cast %21 : vector<8xf32> to vector<8x1xf32>
    %23 = vector.broadcast %22 : vector<8x1xf32> to vector<8x4xf32>
    %24 = arith.cmpf oeq, %19, %23 : vector<8x4xf32>
    %c4_i32 = arith.constant 4 : i32
    %25 = vector.shape_cast %20 : vector<1x4xi32> to vector<1x4xi32>
    %26 = vector.broadcast %25 : vector<1x4xi32> to vector<8x4xi32>
    %27 = vector.broadcast %c4_i32 : i32 to vector<8x4xi32>
    %28 = arith.select %24, %26, %27 : vector<8x4xi1>, vector<8x4xi32>
    %cst_13 = arith.constant dense<2147483647> : vector<8xi32>
    %29 = vector.multi_reduction <minsi>, %28, %cst_13 [1] : vector<8x4xi32> to vector<8xi32>
    %30 = vector.shape_cast %29 : vector<8xi32> to vector<8x1xi32>
    %31 = vector.broadcast %20 : vector<1x4xi32> to vector<8x4xi32>
    %32 = vector.broadcast %30 : vector<8x1xi32> to vector<8x4xi32>
    %33 = arith.cmpi eq, %31, %32 : vector<8x4xi32>
    %34 = arith.extui %33 : vector<8x4xi1> to vector<8x4xi32>
    %35 = arith.sitofp %34 : vector<8x4xi32> to vector<8x4xf32>
    %cst_14 = arith.constant 1.000000e+00 : f32
    %36 = vector.broadcast %cst_14 : f32 to vector<8x4xf32>
    %37 = arith.subf %36, %35 : vector<8x4xf32>
    %38 = arith.mulf %19, %37 : vector<8x4xf32>
    %cst_15 = arith.constant dense<0xFF800000> : vector<8xf32>
    %39 = vector.multi_reduction <maximumf>, %38, %cst_15 [1] : vector<8x4xf32> to vector<8xf32>
    %40 = vector.shape_cast %39 : vector<8xf32> to vector<8x1xf32>
    %41 = vector.broadcast %40 : vector<8x1xf32> to vector<8x4xf32>
    %42 = arith.cmpf oeq, %38, %41 : vector<8x4xf32>
    %c4_i32_16 = arith.constant 4 : i32
    %43 = vector.shape_cast %20 : vector<1x4xi32> to vector<1x4xi32>
    %44 = vector.broadcast %43 : vector<1x4xi32> to vector<8x4xi32>
    %45 = vector.broadcast %c4_i32_16 : i32 to vector<8x4xi32>
    %46 = arith.select %42, %44, %45 : vector<8x4xi1>, vector<8x4xi32>
    %cst_17 = arith.constant dense<2147483647> : vector<8xi32>
    %47 = vector.multi_reduction <minsi>, %46, %cst_17 [1] : vector<8x4xi32> to vector<8xi32>
    %48 = vector.shape_cast %47 : vector<8xi32> to vector<8x1xi32>
    %49 = vector.broadcast %20 : vector<1x4xi32> to vector<8x4xi32>
    %50 = vector.broadcast %48 : vector<8x1xi32> to vector<8x4xi32>
    %51 = arith.cmpi eq, %49, %50 : vector<8x4xi32>
    %52 = arith.extui %51 : vector<8x4xi1> to vector<8x4xi32>
    %53 = arith.sitofp %52 : vector<8x4xi32> to vector<8x4xf32>
    %54 = arith.addf %22, %40 : vector<8x1xf32>
    %cst_18 = arith.constant 9.99999971E-10 : f32
    %55 = vector.broadcast %cst_18 : f32 to vector<8x1xf32>
    %56 = arith.addf %54, %55 : vector<8x1xf32>
    %57 = arith.divf %22, %56 : vector<8x1xf32>
    %58 = arith.divf %40, %56 : vector<8x1xf32>
    %c0_19 = arith.constant 0 : index
    %c0_20 = arith.constant 0 : index
    %c0_21 = arith.constant 0 : index
    %59 = vector.load %arg7[%c0_19, %c0_20, %c0_21] : memref<1x1x8xf32, #tpu.memory_space<vmem>>, vector<1x1x8xf32>
    %60 = vector.shape_cast %59 : vector<1x1x8xf32> to vector<1x8xf32>
    %cst_22 = arith.constant dense<0.000000e+00> : vector<4xf32>
    %61 = vector.multi_reduction <add>, %35, %cst_22 [0] : vector<8x4xf32> to vector<4xf32>
    %62 = vector.shape_cast %61 : vector<4xf32> to vector<1x4xf32>
    %cst_23 = arith.constant dense<0.000000e+00> : vector<4xf32>
    %63 = vector.multi_reduction <add>, %19, %cst_23 [0] : vector<8x4xf32> to vector<4xf32>
    %64 = vector.shape_cast %63 : vector<4xf32> to vector<1x4xf32>
    %65 = tpu.concatenate %62, %64 in 1 : vector<1x4xf32>, vector<1x4xf32> -> vector<1x8xf32>
    %66 = arith.addf %60, %65 : vector<1x8xf32>
    %c0_24 = arith.constant 0 : index
    %c0_25 = arith.constant 0 : index
    %c0_26 = arith.constant 0 : index
    %67 = vector.load %arg7[%c0_24, %c0_25, %c0_26] : memref<1x1x8xf32, #tpu.memory_space<vmem>>, vector<1x1x8xf32>
    %68 = vector.shape_cast %67 : vector<1x1x8xf32> to vector<1x8xf32>
    %69 = vector.shape_cast %66 : vector<1x8xf32> to vector<1x1x8xf32>
    tpu.vector_store %arg7[%c0_24, %c0_25, %c0_26], %69 {strides = array<i32>} : memref<1x1x8xf32, #tpu.memory_space<vmem>>, vector<1x1x8xf32>,
    %cst_27 = arith.constant 5.000000e+00 : f32
    %70 = vector.broadcast %cst_27 : f32 to vector<8x1xf32>
    %71 = arith.mulf %58, %70 : vector<8x1xf32>
    %72 = arith.cmpf olt, %7, %71 : vector<8x1xf32>
    %73 = arith.extui %72 : vector<8x1xi1> to vector<8x1xi32>
    %74 = arith.sitofp %73 : vector<8x1xi32> to vector<8x1xf32>
    %75 = vector.broadcast %74 : vector<8x1xf32> to vector<8x4xf32>
    %76 = arith.mulf %53, %75 : vector<8x4xf32>
    %77 = tpu.concatenate %35, %76 in 1 : vector<8x4xf32>, vector<8x4xf32> -> vector<8x8xf32>
    %78 = arith.truncf %77 : vector<8x8xf32> to vector<8x8xbf16>
    %cst_28 = arith.constant dense<0.000000e+00> : vector<8x8xf32>
    %79 = tpu.matmul %8, %78, %cst_28 {dimension_numbers = #tpu.dot_dimension_numbers<[1], [0], [0], [1], [0, 0, 1, 1], [], []>} : vector<8x8xbf16>, vector<8x8xbf16>, vector<8x8xf32> -> vector<8x8xf32>
    %c0_29 = arith.constant 0 : index
    %c0_30 = arith.constant 0 : index
    %80 = vector.load %arg8[%c0_29, %c0_30] : memref<1x8xf32, #tpu.memory_space<vmem>>, vector<1x8xf32>
    %81 = vector.broadcast %80 : vector<1x8xf32> to vector<8x8xf32>
    %82 = arith.addf %79, %81 : vector<8x8xf32>
    %c0_31 = arith.constant 0 : index
    %c0_32 = arith.constant 0 : index
    %83 = vector.load %arg8[%c0_31, %c0_32] : memref<1x8xf32, #tpu.memory_space<vmem>>, vector<1x8xf32>
    %cst_33 = arith.constant dense<0.000000e+00> : vector<8xf32>
    %84 = vector.multi_reduction <add>, %77, %cst_33 [0] : vector<8x8xf32> to vector<8xf32>
    %85 = vector.shape_cast %84 : vector<8xf32> to vector<1x8xf32>
    %86 = arith.addf %83, %85 : vector<1x8xf32>
    %c0_34 = arith.constant 0 : index
    %c0_35 = arith.constant 0 : index
    %87 = vector.load %arg8[%c0_34, %c0_35] : memref<1x8xf32, #tpu.memory_space<vmem>>, vector<1x8xf32>
    tpu.vector_store %arg8[%c0_34, %c0_35], %86 {strides = array<i32>} : memref<1x8xf32, #tpu.memory_space<vmem>>, vector<1x8xf32>,
    %88 = vector.extract_strided_slice %82 {offsets = [0, 0], sizes = [8, 4], strides = [1, 1]} : vector<8x8xf32> to vector<8x4xf32>
    %89 = arith.mulf %88, %35 : vector<8x4xf32>
    %cst_36 = arith.constant 4.000000e+00 : f32
    %90 = vector.broadcast %cst_36 : f32 to vector<8x4xf32>
    %91 = arith.cmpf olt, %89, %90 : vector<8x4xf32>
    %92 = arith.extui %91 : vector<8x4xi1> to vector<8x4xi32>
    %93 = arith.sitofp %92 : vector<8x4xi32> to vector<8x4xf32>
    %94 = arith.mulf %35, %93 : vector<8x4xf32>
    %cst_37 = arith.constant dense<0.000000e+00> : vector<8xf32>
    %95 = vector.multi_reduction <add>, %94, %cst_37 [1] : vector<8x4xf32> to vector<8xf32>
    %96 = vector.shape_cast %95 : vector<8xf32> to vector<8x1xf32>
    %cst_38 = arith.constant dense<0.000000e+00> : vector<8xf32>
    %97 = vector.multi_reduction <add>, %89, %cst_38 [1] : vector<8x4xf32> to vector<8xf32>
    %98 = vector.shape_cast %97 : vector<8xf32> to vector<8x1xf32>
    %99 = arith.mulf %57, %96 : vector<8x1xf32>
    %cst_39 = arith.constant 0.000000e+00 : f32
    %100 = vector.broadcast %cst_39 : f32 to vector<8x1xf32>
    %101 = arith.cmpf ogt, %96, %100 : vector<8x1xf32>
    %102 = arith.sitofp %30 : vector<8x1xi32> to vector<8x1xf32>
    %cst_40 = arith.constant 4.000000e+00 : f32
    %103 = vector.broadcast %cst_40 : f32 to vector<8x1xf32>
    %104 = arith.mulf %102, %103 : vector<8x1xf32>
    %105 = arith.addf %104, %98 : vector<8x1xf32>
    %cst_41 = arith.constant -1.000000e+00 : f32
    %106 = vector.broadcast %cst_41 : f32 to vector<8x1xf32>
    %107 = arith.select %101, %105, %106 : vector<8x1xi1>, vector<8x1xf32>
    %108 = vector.extract_strided_slice %82 {offsets = [0, 4], sizes = [8, 4], strides = [1, 1]} : vector<8x8xf32> to vector<8x4xf32>
    %109 = arith.mulf %108, %76 : vector<8x4xf32>
    %cst_42 = arith.constant dense<0.000000e+00> : vector<8xf32>
    %110 = vector.multi_reduction <add>, %109, %cst_42 [1] : vector<8x4xf32> to vector<8xf32>
    %111 = vector.shape_cast %110 : vector<8xf32> to vector<8x1xf32>
    %112 = arith.mulf %58, %74 : vector<8x1xf32>
    %113 = tpu.iota {dimensions = array<i32: 1>} : vector<1x8xi32>
    %c0_i32_43 = arith.constant 0 : i32
    %114 = vector.broadcast %c0_i32_43 : i32 to vector<1x8xi32>
    %115 = arith.cmpi eq, %113, %114 : vector<1x8xi32>
    %c1_i32 = arith.constant 1 : i32
    %116 = vector.broadcast %c1_i32 : i32 to vector<1x8xi32>
    %117 = arith.cmpi eq, %113, %116 : vector<1x8xi32>
    %c2_i32 = arith.constant 2 : i32
    %118 = vector.broadcast %c2_i32 : i32 to vector<1x8xi32>
    %119 = arith.cmpi eq, %113, %118 : vector<1x8xi32>
    %c3_i32 = arith.constant 3 : i32
    %120 = vector.broadcast %c3_i32 : i32 to vector<1x8xi32>
    %121 = arith.cmpi eq, %113, %120 : vector<1x8xi32>
    %122 = arith.sitofp %48 : vector<8x1xi32> to vector<8x1xf32>
    %c4_i32_44 = arith.constant 4 : i32
    %123 = vector.broadcast %c4_i32_44 : i32 to vector<1x8xi32>
    %124 = arith.cmpi eq, %113, %123 : vector<1x8xi32>
    %cst_45 = arith.constant 0.000000e+00 : f32
    %125 = vector.shape_cast %124 : vector<1x8xi1> to vector<1x8xi1>
    %126 = vector.broadcast %125 : vector<1x8xi1> to vector<8x8xi1>
    %127 = vector.shape_cast %111 : vector<8x1xf32> to vector<8x1xf32>
    %128 = vector.broadcast %127 : vector<8x1xf32> to vector<8x8xf32>
    %129 = vector.broadcast %cst_45 : f32 to vector<8x8xf32>
    %130 = arith.select %126, %128, %129 : vector<8x8xi1>, vector<8x8xf32>
    %131 = vector.shape_cast %121 : vector<1x8xi1> to vector<1x8xi1>
    %132 = vector.broadcast %131 : vector<1x8xi1> to vector<8x8xi1>
    %133 = vector.shape_cast %122 : vector<8x1xf32> to vector<8x1xf32>
    %134 = vector.broadcast %133 : vector<8x1xf32> to vector<8x8xf32>
    %135 = arith.select %132, %134, %130 : vector<8x8xi1>, vector<8x8xf32>
    %136 = vector.shape_cast %119 : vector<1x8xi1> to vector<1x8xi1>
    %137 = vector.broadcast %136 : vector<1x8xi1> to vector<8x8xi1>
    %138 = vector.shape_cast %112 : vector<8x1xf32> to vector<8x1xf32>
    %139 = vector.broadcast %138 : vector<8x1xf32> to vector<8x8xf32>
    %140 = arith.select %137, %139, %135 : vector<8x8xi1>, vector<8x8xf32>
    %141 = vector.shape_cast %117 : vector<1x8xi1> to vector<1x8xi1>
    %142 = vector.broadcast %141 : vector<1x8xi1> to vector<8x8xi1>
    %143 = vector.shape_cast %107 : vector<8x1xf32> to vector<8x1xf32>
    %144 = vector.broadcast %143 : vector<8x1xf32> to vector<8x8xf32>
    %145 = arith.select %142, %144, %140 : vector<8x8xi1>, vector<8x8xf32>
    %146 = vector.shape_cast %115 : vector<1x8xi1> to vector<1x8xi1>
    %147 = vector.broadcast %146 : vector<1x8xi1> to vector<8x8xi1>
    %148 = vector.shape_cast %99 : vector<8x1xf32> to vector<8x1xf32>
    %149 = vector.broadcast %148 : vector<8x1xf32> to vector<8x8xf32>
    %150 = arith.select %147, %149, %145 : vector<8x8xi1>, vector<8x8xf32>
    %c0_46 = arith.constant 0 : index
    %c0_47 = arith.constant 0 : index
    %c0_48 = arith.constant 0 : index
    %151 = vector.load %arg6[%c0_46, %c0_47, %c0_48] : memref<1x8x8xf32, #tpu.memory_space<vmem>>, vector<1x8x8xf32>
    %152 = vector.shape_cast %151 : vector<1x8x8xf32> to vector<8x8xf32>
    %153 = vector.shape_cast %150 : vector<8x8xf32> to vector<1x8x8xf32>
    tpu.vector_store %arg6[%c0_46, %c0_47, %c0_48], %153 {strides = array<i32>} : memref<1x8x8xf32, #tpu.memory_space<vmem>>, vector<1x8x8xf32>,
    return
  }
  func.func @transform_0(%arg0: i32, %arg1: i32) -> (i32, i32, i32) {
    %c0_i32 = arith.constant 0 : i32
    %c0_i32_0 = arith.constant 0 : i32
    return %arg0, %arg1, %c0_i32 : i32, i32, i32
  }
  func.func @transform_1(%arg0: i32, %arg1: i32) -> (i32, i32) {
    %c0_i32 = arith.constant 0 : i32
    %c0_i32_0 = arith.constant 0 : i32
    %c0_i32_1 = arith.constant 0 : i32
    return %c0_i32, %c0_i32_0 : i32, i32
  }
  func.func @transform_2(%arg0: i32, %arg1: i32) -> (i32, i32, i32) {
    %c0_i32 = arith.constant 0 : i32
    %c0_i32_0 = arith.constant 0 : i32
    return %arg0, %arg1, %c0_i32 : i32, i32, i32
  }
  func.func @transform_3(%arg0: i32, %arg1: i32) -> (i32, i32) {
    %c0_i32 = arith.constant 0 : i32
    %c0_i32_0 = arith.constant 0 : i32
    %c0_i32_1 = arith.constant 0 : i32
    return %c0_i32, %c0_i32_0 : i32, i32
  }
  func.func @transform_4(%arg0: i32, %arg1: i32) -> (i32, i32, i32) {
    %c0_i32 = arith.constant 0 : i32
    %c0_i32_0 = arith.constant 0 : i32
    return %arg0, %arg1, %c0_i32 : i32, i32, i32
  }
  func.func @transform_5(%arg0: i32, %arg1: i32) -> (i32, i32, i32) {
    %c0_i32 = arith.constant 0 : i32
    %c0_i32_0 = arith.constant 0 : i32
    %c0_i32_1 = arith.constant 0 : i32
    return %arg0, %c0_i32, %c0_i32_0 : i32, i32, i32
  }
}

</mosaic_0001>

<llo_original>
// kernel: tpu_custom_call.1
$region0: #{tpu_custom_call.1}
  #allocation0 [shape = 'u32[]', space=smem, size = 0x4, offset = 0x4, fixed_abs, tag = 'smem constant byte address 0x4 - core index']
  #allocation1 [shape = 'u32[144,128]{1,0:T(1,128)}', space=vmem, size = 0x12000, scoped, tag = 'internal scratch']
  #allocation2 [shape = 'f32[1,8]{1,0:T(1,128)}', space=vmem, size = 0x200, scoped, tag = 'scratch operand']
  %s0 = inlined_call_operand.vmem [shape: f32[2,8,32], index: 0, kind: input, shape index: {}]
  %s1 = inlined_call_operand.vmem [shape: f32[32,4], index: 1, kind: input, shape index: {}]
  %s2 = inlined_call_operand.vmem [shape: f32[2,8,1], index: 2, kind: input, shape index: {}]
  %s3 = inlined_call_operand.vmem [shape: bf16[8,8], index: 3, kind: input, shape index: {}]
  %s4 = inlined_call_operand.hbm [shape: f32[2,8,8], index: 4, kind: output, shape index: {0}]
  %s5 = inlined_call_operand.hbm [shape: f32[2,1,8], index: 5, kind: output, shape index: {1}]
  %6 = xla_tuple %s4, %s5
  %s7 = sld [smem:[#allocation0]]
  $region61: #{tpu_custom_call.1} parent=0
    _
  %s9 = ssub.s32 1, %s7
  %s10 = scalar_select 0, %s9, %s7
  $region1: #{tpu_custom_call.1} parent=0
    #allocation3 [shape = 'u8[8192]{0}', space=vmem, size = 0x2000, scoped, tag = 'output window, operand 0']
    #allocation4 [shape = 's32[2]{0}', space=sflag, size = 0x8, scoped, tag = 'scoped memory for tpu_custom_call.1']
    #allocation5 [shape = 'u8[1024]{0}', space=vmem, size = 0x400, scoped, tag = 'output window, operand 1']
    #allocation6 [shape = 's32[2]{0}', space=sflag, size = 0x8, scoped, tag = 'scoped memory for tpu_custom_call.1']
    %11 = vsyncpa [#allocation4], 0
    %s12 = scalar_lea.sflag [#allocation4], 1
    %13 = vsyncpa %s12, 0
    %14 = vsyncpa [#allocation6], 0
    %s15 = scalar_lea.sflag [#allocation6], 1
    %16 = vsyncpa %s15, 0
    loop: start=0, step=1, limit=4
    $region2: #{tpu_custom_call.1} parent=1 // loop_pre_header
      _
    $region3: #{tpu_custom_call.1} parent=1 // loop_header
      %s18 = sphi 0, %s22
      %p19 = scmp.ge.s32.totalorder %s18, 4
      %s25 = sphi 0, %s37
      %s26 = sphi 0, %s33
      %s27 = sphi 0, %s25
      %s28 = sphi 0, %s26
      %s29 = sphi 0, %s27
      %s30 = sphi 0, %s28
      %s42 = sphi 0, %s44
      %s45 = sphi 0, %s42
      %s46 = sphi 0, %s45
      %s62 = sphi 0, %s46
      %s66 = sphi 0, %s66
      %s68 = sphi 0, %s66
      %s69 = sphi 0, %s68
      %s83 = sphi 0, %s69
      %s91 = sphi 0, %s93
      %s94 = sphi 0, %s91
      %s95 = sphi 0, %s94
      %s111 = sphi 0, %s95
      %s115 = sphi 0, %s115
      %s117 = sphi 0, %s115
      %s118 = sphi 0, %s117
      %s132 = sphi 0, %s118
      %s140 = sphi 0, %s142
      %s143 = sphi 0, %s140
      %s144 = sphi 0, %s143
      %s160 = sphi 0, %s144
      %s166 = sphi 0, %s168
      %s169 = sphi 0, %s166
      %s170 = sphi 0, %s169
      %s186 = sphi 0, %s170
    $region4: #{tpu_custom_call.1} parent=1 // loop_header_branch
      %21 = sbr.rel (%p19) target = $region8
    $region5: #{tpu_custom_call.1} parent=1 // loop_body
      %s23 = ssub.s32 %s18, 1
      %s24 = ssub.s32 %s18, 2
      %s31 = sadd.s32 1, %s26
      %p32 = scmp.ge.s32.totalorder %s31, 1
      %s33 = scalar_select %p32, 0, %s31
      %s34 = sadd.s32 1, %s25
      %s35 = scalar_select %p32, %s34, %s25
      %p36 = scmp.ge.s32.totalorder %s35, 2
      %s37 = scalar_select %p36, 0, %s35
      %s38 = ssub.s32 %s25, %s37
      %s39 = ssub.s32 %s26, %s33
      %s40 = sor.u32 %s38, %s39
      %p41 = scmp.eq.s32.totalorder %s40, 0
      %s43 = sadd.s32 %s42, 1
      %s44 = scalar_select %p41, %s42, %s43
      %p47 = pneg %p41
      %p48 = scmp.eq.s32.totalorder %s18, 1
      %p49 = por %p47, %p48
      %p50 = scmp.ne.s32.totalorder %s42, %s45
      %p51 = scmp.eq.s32.totalorder %s18, 0
      %p52 = por %p50, %p51
      %p53 = scmp.ne.s32.totalorder %s42, %s45
      %p54 = scmp.eq.s32.totalorder %s23, 1
      %p55 = por %p53, %p54
      %p56 = scmp.ne.s32.totalorder %s45, %s46
      %p57 = scmp.eq.s32.totalorder %s23, 0
      %p58 = por %p56, %p57
      %p59 = scmp.ne.s32.totalorder %s45, %s46
      %p60 = scmp.eq.s32.totalorder %s24, 1
      %p61 = por %p59, %p60
      %p63 = scmp.ne.s32.totalorder %s46, %s62
      %p64 = scmp.eq.s32.totalorder %s24, 0
      %p65 = por %p63, %p64
      %s67 = sadd.s32 %s66, 1
      %p70 = scmp.eq.s32.totalorder %s18, 1
      %p71 = scmp.ne.s32.totalorder %s66, %s68
      %p72 = scmp.eq.s32.totalorder %s18, 0
      %p73 = por %p71, %p72
      %p74 = scmp.ne.s32.totalorder %s66, %s68
      %p75 = scmp.eq.s32.totalorder %s23, 1
      %p76 = por %p74, %p75
      %p77 = scmp.ne.s32.totalorder %s68, %s69
      %p78 = scmp.eq.s32.totalorder %s23, 0
      %p79 = por %p77, %p78
      %p80 = scmp.ne.s32.totalorder %s68, %s69
      %p81 = scmp.eq.s32.totalorder %s24, 1
      %p82 = por %p80, %p81
      %p84 = scmp.ne.s32.totalorder %s69, %s83
      %p85 = scmp.eq.s32.totalorder %s24, 0
      %p86 = por %p84, %p85
      %s87 = ssub.s32 %s25, %s37
      %s88 = ssub.s32 %s26, %s33
      %s89 = sor.u32 %s87, %s88
      %p90 = scmp.eq.s32.totalorder %s89, 0
      %s92 = sadd.s32 %s91, 1
      %s93 = scalar_select %p90, %s91, %s92
      %p96 = pneg %p90
      %p97 = scmp.eq.s32.totalorder %s18, 1
      %p98 = por %p96, %p97
      %p99 = scmp.ne.s32.totalorder %s91, %s94
      %p100 = scmp.eq.s32.totalorder %s18, 0
      %p101 = por %p99, %p100
      %p102 = scmp.ne.s32.totalorder %s91, %s94
      %p103 = scmp.eq.s32.totalorder %s23, 1
      %p104 = por %p102, %p103
      %p105 = scmp.ne.s32.totalorder %s94, %s95
      %p106 = scmp.eq.s32.totalorder %s23, 0
      %p107 = por %p105, %p106
      %p108 = scmp.ne.s32.totalorder %s94, %s95
      %p109 = scmp.eq.s32.totalorder %s24, 1
      %p110 = por %p108, %p109
      %p112 = scmp.ne.s32.totalorder %s95, %s111
      %p113 = scmp.eq.s32.totalorder %s24, 0
      %p114 = por %p112, %p113
      %s116 = sadd.s32 %s115, 1
      %p119 = scmp.eq.s32.totalorder %s18, 1
      %p120 = scmp.ne.s32.totalorder %s115, %s117
      %p121 = scmp.eq.s32.totalorder %s18, 0
      %p122 = por %p120, %p121
      %p123 = scmp.ne.s32.totalorder %s115, %s117
      %p124 = scmp.eq.s32.totalorder %s23, 1
      %p125 = por %p123, %p124
      %p126 = scmp.ne.s32.totalorder %s117, %s118
      %p127 = scmp.eq.s32.totalorder %s23, 0
      %p128 = por %p126, %p127
      %p129 = scmp.ne.s32.totalorder %s117, %s118
      %p130 = scmp.eq.s32.totalorder %s24, 1
      %p131 = por %p129, %p130
      %p133 = scmp.ne.s32.totalorder %s118, %s132
      %p134 = scmp.eq.s32.totalorder %s24, 0
      %p135 = por %p133, %p134
      %s136 = ssub.s32 %s25, %s37
      %s137 = ssub.s32 %s26, %s33
      %s138 = sor.u32 %s136, %s137
      %p139 = scmp.eq.s32.totalorder %s138, 0
      %s141 = sadd.s32 %s140, 1
      %s142 = scalar_select %p139, %s140, %s141
      %p145 = pneg %p139
      %p146 = scmp.eq.s32.totalorder %s18, 1
      %p147 = por %p145, %p146
      %p148 = scmp.ne.s32.totalorder %s140, %s143
      %p149 = scmp.eq.s32.totalorder %s18, 0
      %p150 = por %p148, %p149
      %p151 = scmp.ne.s32.totalorder %s140, %s143
      %p152 = scmp.eq.s32.totalorder %s23, 1
      %p153 = por %p151, %p152
      %p154 = scmp.ne.s32.totalorder %s143, %s144
      %p155 = scmp.eq.s32.totalorder %s23, 0
      %p156 = por %p154, %p155
      %p157 = scmp.ne.s32.totalorder %s143, %s144
      %p158 = scmp.eq.s32.totalorder %s24, 1
      %p159 = por %p157, %p158
      %p161 = scmp.ne.s32.totalorder %s144, %s160
      %p162 = scmp.eq.s32.totalorder %s24, 0
      %p163 = por %p161, %p162
      %s164 = ssub.s32 %s25, %s37
      %p165 = scmp.eq.s32.totalorder %s164, 0
      %s167 = sadd.s32 %s166, 1
      %s168 = scalar_select %p165, %s166, %s167
      %p171 = pneg %p165
      %p172 = scmp.eq.s32.totalorder %s18, 1
      %p173 = por %p171, %p172
      %p174 = scmp.ne.s32.totalorder %s166, %s169
      %p175 = scmp.eq.s32.totalorder %s18, 0
      %p176 = por %p174, %p175
      %p177 = scmp.ne.s32.totalorder %s166, %s169
      %p178 = scmp.eq.s32.totalorder %s23, 1
      %p179 = por %p177, %p178
      %p180 = scmp.ne.s32.totalorder %s169, %s170
      %p181 = scmp.eq.s32.totalorder %s23, 0
      %p182 = por %p180, %p181
      %p183 = scmp.ne.s32.totalorder %s169, %s170
      %p184 = scmp.eq.s32.totalorder %s24, 1
      %p185 = por %p183, %p184
      %p187 = scmp.ne.s32.totalorder %s170, %s186
      %p188 = scmp.eq.s32.totalorder %s24, 0
      %p189 = por %p187, %p188
      %p190 = scmp.le.s32.totalorder 1, %s18
      %p191 = scmp.lt.s32.totalorder %s18, 3
      %p192 = pnand %p190, %p191
      %p193 = pneg %p192
      // Predicated region
      $region9: #{tpu_custom_call.1} parent=5 // pred_check
        _
      $region10: #{tpu_custom_call.1} parent=5 // pred_check_branch
        %195 = sbr.rel (%p192) target = $region12
      $region11: #{tpu_custom_call.1} parent=5 // pred_region
        %s196 = ssub.s32 %s18, 1
        // Predicated region
        $region13: #{tpu_custom_call.1} parent=11 // pred_check
          %p197 = pneg %p79
        $region14: #{tpu_custom_call.1} parent=11 // pred_check_branch
          %199 = sbr.rel (%p197) target = $region16
        $region15: #{tpu_custom_call.1} parent=11 // pred_region
          _
        $region16: #{tpu_custom_call.1} parent=11 // pred_fallthru
          _
        // Predicated region
        $region17: #{tpu_custom_call.1} parent=11 // pred_check
          %p200 = pneg %p128
        $region18: #{tpu_custom_call.1} parent=11 // pred_check_branch
          %202 = sbr.rel (%p200) target = $region20
        $region19: #{tpu_custom_call.1} parent=11 // pred_region
          _
        $region20: #{tpu_custom_call.1} parent=11 // pred_fallthru
          _
      $region12: #{tpu_custom_call.1} parent=5 // pred_fallthru
        _
      %p203 = scmp.lt.s32.totalorder %s18, 2
      // Predicated region
      $region21: #{tpu_custom_call.1} parent=5 // pred_check
        %p204 = pneg %p203
      $region22: #{tpu_custom_call.1} parent=5 // pred_check_branch
        %206 = sbr.rel (%p204) target = $region24
      $region23: #{tpu_custom_call.1} parent=5 // pred_region
        // Predicated region
        $region25: #{tpu_custom_call.1} parent=23 // pred_check
          %p207 = pneg %p52
        $region26: #{tpu_custom_call.1} parent=23 // pred_check_branch
          %209 = sbr.rel (%p207) target = $region28
        $region27: #{tpu_custom_call.1} parent=23 // pred_region
          %p210 = scmp.lt.s32.totalorder %s25, 1
          %s211 = scalar_select %p210, %s25, 1
          %p212 = scmp.lt.s32.totalorder %s26, 0
          %s213 = scalar_select %p212, %s26, 0
          %s214 = sadd.s32 %s213, %s211
          %s215 = smul.addr %s214, 8
          %s216 = scalar_lea.vmem %s0, %s215
        $region28: #{tpu_custom_call.1} parent=23 // pred_fallthru
          _
        // Predicated region
        $region29: #{tpu_custom_call.1} parent=23 // pred_check
          %p217 = pneg %p101
        $region30: #{tpu_custom_call.1} parent=23 // pred_check_branch
          %219 = sbr.rel (%p217) target = $region32
        $region31: #{tpu_custom_call.1} parent=23 // pred_region
          %p220 = scmp.lt.s32.totalorder %s25, 1
          %s221 = scalar_select %p220, %s25, 1
          %p222 = scmp.lt.s32.totalorder %s26, 0
          %s223 = scalar_select %p222, %s26, 0
          %s224 = sadd.s32 %s223, %s221
          %s225 = smul.addr %s224, 8
          %s226 = scalar_lea.vmem %s2, %s225
        $region32: #{tpu_custom_call.1} parent=23 // pred_fallthru
          _
      $region24: #{tpu_custom_call.1} parent=5 // pred_fallthru
        _
      %p227 = scmp.le.s32.totalorder 1, %s18
      %p228 = scmp.lt.s32.totalorder %s18, 3
      %p229 = pnand %p227, %p228
      %p230 = pneg %p229
      // Predicated region
      $region33: #{tpu_custom_call.1} parent=5 // pred_check
        _
      $region34: #{tpu_custom_call.1} parent=5 // pred_check_branch
        %232 = sbr.rel (%p229) target = $region36
      $region35: #{tpu_custom_call.1} parent=5 // pred_region
        %s233 = ssub.s32 %s18, 1
        %p234 = scmp.lt.s32.totalorder %s27, 1
        %s235 = scalar_select %p234, %s27, 1
        %p236 = scmp.lt.s32.totalorder %s28, 0
        %s237 = scalar_select %p236, %s28, 0
        %s238 = sadd.s32 %s237, %s235
        %s239 = smul.addr %s238, 8
        %s240 = scalar_lea.vmem %s0, %s239
        %p241 = pneg %p58
        %p242 = pneg %p55
        %p243 = pneg %p79
        %p244 = pneg %p76
        %p245 = scmp.lt.s32.totalorder %s27, 1
        %s246 = scalar_select %p245, %s27, 1
        %p247 = scmp.lt.s32.totalorder %s28, 0
        %s248 = scalar_select %p247, %s28, 0
        %s249 = sadd.s32 %s248, %s246
        %s250 = smul.addr %s249, 8
        %s251 = scalar_lea.vmem %s2, %s250
        %p252 = pneg %p107
        %p253 = pneg %p104
        %p254 = pneg %p128
        %p255 = pneg %p125
        %p256 = pneg %p156
        %p257 = pneg %p153
        %s258 = sand.u32 %s143, 1
        %s259 = scalar_lea.sflag [#allocation4], %s258
        %s260 = sand.u32 %s143, 1
        %s261 = smul.addr %s260, 8
        %s262 = scalar_lea.vmem [#allocation3], %s261
        %p263 = pneg %p182
        %p264 = pneg %p179
        %s265 = sand.u32 %s169, 1
        %s266 = scalar_lea.sflag [#allocation6], %s265
        %s267 = sand.u32 %s169, 1
        %s268 = scalar_lea.vmem [#allocation5], %s267
        %p269 = scmp.lt.s32.totalorder %s27, 1
        %s270 = scalar_select %p269, %s27, 1
        %p271 = scmp.lt.s32.totalorder %s28, 0
        %s272 = scalar_select %p271, %s28, 0
        %s273 = sadd.s32 %s272, %s270
        %s274 = smul.addr %s273, 8
        %s275 = scalar_lea.vmem %s0, %s274
        %p276 = scmp.lt.s32.totalorder %s27, 1
        %s277 = scalar_select %p276, %s27, 1
        %p278 = scmp.lt.s32.totalorder %s28, 0
        %s279 = scalar_select %p278, %s28, 0
        %s280 = sadd.s32 %s279, %s277
        %s281 = smul.addr %s280, 8
        %s282 = scalar_lea.vmem %s2, %s281
        %p284 = scmp.eq.s32.totalorder %s28, 0
        // Predicated region
        $region37: #{tpu_custom_call.1} parent=35 // pred_check
          %p285 = pneg %p284
        $region38: #{tpu_custom_call.1} parent=35 // pred_check_branch
          %287 = sbr.rel (%p285) target = $region40
        $region39: #{tpu_custom_call.1} parent=35 // pred_region
          %vm288 = vcmask 57344
          %289 = vst.msk [vmem:[#allocation2] sm:$0x1] %vm288, 0.0
          %290 = vst.msk [vmem:[%s268] sm:$0x1] %vm288, 0.0
        $region40: #{tpu_custom_call.1} parent=35 // pred_fallthru
          _
        %v291 = vld [vmem:[%s275] sm:$0xff]
        %v292 = vld [vmem:[%s1] sm:$0xff]
        %v293 = vld [vmem:[%s1 + $0x8] sm:$0xff]
        %v294 = vld [vmem:[%s1 + $0x10] sm:$0xff]
        %v295 = vld [vmem:[%s1 + $0x18] sm:$0xff]
        %v296 = vld [vmem:[%s282] sm:$0xff]
        %v297 = vld [vmem:[%s3] sm:$0xf]
        %vm298 = vcmask 261120
        %v300 = vsel %vm298, %v291, 0
        %302 = vmatprep.subr.mxu0 0.0
        %303 = vmatpush1.msra.mxu0 0.0
        %304 = vmatprep.subr.mxu0 0.0
        %305 = vmatpush1.msra.mxu0 0.0
        %306 = vmatprep.subr.mxu0 0.0
        %307 = vmatpush1.msra.mxu0 0.0
        %308 = vmatprep.subr.mxu0 0.0
        %309 = vmatpush1.msra.mxu0 0.0
        %310 = vmatprep.subr.mxu0 0.0
        %311 = vmatpush1.msra.mxu0 0.0
        %312 = vmatprep.subr.mxu0 0.0
        %313 = vmatpush1.msra.mxu0 0.0
        %314 = vmatprep.subr.mxu0 0.0
        %315 = vmatpush1.msra.mxu0 0.0
        %316 = vmatprep.subr.mxu0 0.0
        %317 = vmatpush1.msra.mxu0 0.0
        %318 = vmatprep.subr.mxu0 0.0
        %319 = vmatpush1.msra.mxu0 0.0
        %320 = vmatprep.subr.mxu0 0.0
        %321 = vmatpush1.msra.mxu0 0.0
        %322 = vmatprep.subr.mxu0 0.0
        %323 = vmatpush1.msra.mxu0 0.0
        %324 = vmatprep.subr.mxu0 0.0
        %325 = vmatpush1.msra.mxu0 0.0
        %326 = vmatprep.subr.mxu0 0.0
        %327 = vmatpush1.msra.mxu0 %v295
        %328 = vmatprep.subr.mxu0 0.0
        %329 = vmatpush1.msra.mxu0 %v294
        %330 = vmatprep.subr.mxu0 0.0
        %331 = vmatpush1.msra.mxu0 %v293
        %332 = vmatprep.subr.mxu0 0.0
        %333 = vmatpush1.msra.mxu0 %v292
        %334 = vmatprep.subr.mxu0 0.0
        %335 = vmatpush2.msra.mxu0 0.0
        %336 = vmatprep.subr.mxu0 0.0
        %337 = vmatpush2.msra.mxu0 0.0
        %338 = vmatprep.subr.mxu0 0.0
        %339 = vmatpush2.msra.mxu0 0.0
        %340 = vmatprep.subr.mxu0 0.0
        %341 = vmatpush2.msra.mxu0 0.0
        %342 = vmatprep.subr.mxu0 0.0
        %343 = vmatpush2.msra.mxu0 0.0
        %344 = vmatprep.subr.mxu0 0.0
        %345 = vmatpush2.msra.mxu0 0.0
        %346 = vmatprep.subr.mxu0 0.0
        %347 = vmatpush2.msra.mxu0 0.0
        %348 = vmatprep.subr.mxu0 0.0
        %349 = vmatpush2.msra.mxu0 0.0
        %350 = vmatprep.subr.mxu0 0.0
        %351 = vmatpush2.msra.mxu0 0.0
        %352 = vmatprep.subr.mxu0 0.0
        %353 = vmatpush2.msra.mxu0 0.0
        %354 = vmatprep.subr.mxu0 0.0
        %355 = vmatpush2.msra.mxu0 0.0
        %356 = vmatprep.subr.mxu0 0.0
        %357 = vmatpush2.msra.mxu0 0.0
        %358 = vmatprep.subr.mxu0 0.0
        %359 = vmatpush2.msra.mxu0 0.0
        %360 = vmatprep.subr.mxu0 0.0
        %361 = vmatpush2.msra.mxu0 0.0
        %362 = vmatprep.subr.mxu0 0.0
        %363 = vmatpush2.msra.mxu0 0.0
        %364 = vmatprep.subr.mxu0 0.0
        %365 = vmatpush2.msra.mxu0 0.0
        %366 = vmatprep.mubr.f32.mxu0 0.0
        %367 = vmatmul.mubr.f32.gmra.mxu0 %v300
        %v368 = vpop.f32.mrf.mxu0
        %v369 = vadd.f32 0.0, %v368
        %v370 = vpop.f32.mrf.mxu0
        %371 = vdwg.mxu0
        %vm372 = vcmask 31744
        %v373 = vsel %vm372, %v369, -inf
        %374 = vmax.xlane.f32.xlu0 %v373
        %v375 = vpop.xlane.xlu0 %374
        %v376 = vsub.f32 %v369, %v375
        %v377 = vmul.f32 %v376, 1.442695
        %v378 = vpow.pop %v377
        %v379 = vsel %vm372, %v378, 0.0
        %380 = vadd.xlane.f32.xlu0 %v379
        %v381 = vpop.xlane.xlu0 %380
        %v382 = vrcp.pop %v381
        %v383 = vmul.f32 %v378, %v382
        %v384 = vlaneseq
        %v385 = vand.u32 %v384, 127
        %v386 = vsel %vm372, %v383, -inf
        %387 = vmax.xlane.f32.xlu0 %v386
        %v388 = vpop.xlane.xlu0 %387
        %vm389 = vcmp.eq.f32.partialorder %v383, %v388
        %v390 = vsel %vm389, %v385, 4
        %v391 = vsel %vm372, %v390, 2147483647
        %v392 = vand.u32 %v391, 65535
        %v393 = vshra.s32 %v391, 16
        %v394 = vcvt.s32.f32 %v392
        %v395 = vcvt.s32.f32 %v393
        %396 = vmin.xlane.f32.xlu0 %v395
        %v397 = vpop.xlane.xlu0 %396
        %vm398 = vcmp.eq.f32.partialorder %v395, %v397
        %v399 = vsel %vm398, %v394, inf
        %400 = vmin.xlane.f32.xlu0 %v399
        %v401 = vpop.xlane.xlu0 %400
        %v402 = vcvt.f32.s32 %v401
        %v403 = vcvt.f32.s32 %v397
        %v404 = vshll.u32 %v403, 16
        %v405 = vadd.s32 %v404, %v402
        %vm406 = vcmp.eq.s32.totalorder %v385, %v405
        %v407 = vsel %vm406, 1, 0
        %v408 = vcvt.s32.f32 %v407
        %v409 = vsub.f32 1.0, %v408
        %v410 = vmul.f32 %v383, %v409
        %v411 = vsel %vm372, %v410, -inf
        %412 = vmax.xlane.f32.xlu0 %v411
        %v413 = vpop.xlane.xlu0 %412
        %vm414 = vcmp.eq.f32.partialorder %v410, %v413
        %v415 = vsel %vm414, %v385, 4
        %v416 = vsel %vm372, %v415, 2147483647
        %v417 = vand.u32 %v416, 65535
        %v418 = vshra.s32 %v416, 16
        %v419 = vcvt.s32.f32 %v417
        %v420 = vcvt.s32.f32 %v418
        %421 = vmin.xlane.f32.xlu0 %v420
        %v422 = vpop.xlane.xlu0 %421
        %vm423 = vcmp.eq.f32.partialorder %v420, %v422
        %v424 = vsel %vm423, %v419, inf
        %425 = vmin.xlane.f32.xlu0 %v424
        %v426 = vpop.xlane.xlu0 %425
        %v427 = vcvt.f32.s32 %v426
        %v428 = vcvt.f32.s32 %v422
        %v429 = vshll.u32 %v428, 16
        %v430 = vadd.s32 %v429, %v427
        %vm431 = vcmp.eq.s32.totalorder %v385, %v430
        %v432 = vsel %vm431, 1, 0
        %v433 = vcvt.s32.f32 %v432
        %v434 = vadd.f32 %v388, %v413
        %v435 = vadd.f32 %v434, 1e-09
        %v436 = vrcp.pop %v435
        %v437 = vmul.f32 %v388, %v436
        %v438 = vmul.f32 %v413, %v436
        %v439 = vld [vmem:[%s268] sm:$0x1]
        %v440 = vsel %vm372, %v408, 0.0
        %v441 = vrot.slane %v440, 4
        %v442 = vadd.f32 %v440, %v441
        %v443 = vrot.slane %v442, 2
        %v444 = vadd.f32 %v442, %v443
        %v445 = vrot.slane %v444, 1
        %v446 = vadd.f32 %v444, %v445
        %v447 = vsel %vm372, %v383, 0.0
        %v448 = vrot.slane %v447, 4
        %v449 = vadd.f32 %v447, %v448
        %v450 = vrot.slane %v449, 2
        %v451 = vadd.f32 %v449, %v450
        %v452 = vrot.slane %v451, 1
        %v453 = vadd.f32 %v451, %v452
        %455 = vrot.lane.b32.xlu0 %v453, 4
        %v456 = vpop.permute.xlu0 %455
        %v458 = vsel %vm372, %v446, %v456
        %v459 = vadd.f32 %v439, %v458
        %vm460 = vcmask 57344
        %461 = vst.msk [vmem:[%s268] sm:$0x1] %vm460, %v459
        %v462 = vmul.f32 %v438, 5.0
        %vm463 = vcmp.lt.f32.partialorder %v296, %v462
        %v464 = vsel %vm463, 1, 0
        %v465 = vcvt.s32.f32 %v464
        %467 = vset.pattern.permute.xlu0 0
        %468 = vperm.xlu0 %467, %v465
        %v469 = vpop.permute.xlu0 %468
        %v471 = vmul.f32 %v433, %v469
        %473 = vrot.lane.b32.xlu0 %v471, 4
        %v474 = vpop.permute.xlu0 %473
        %v476 = vsel %vm372, %v408, %v474
        %v477 = vpack.c.bf16 %v476, %v476
        %v478 = vld [vmem:[#allocation2] sm:$0x1]
        %v480 = vlaneseq
        %v481 = vshrl.u32 %v480, 7
        %v482 = vsub.s32 0, %v481
        %v483 = vrot.slane %v478, %v482
        %vm485 = vcmask 64512
        %v487 = vsel %vm485, %v297, 0
        %vm489 = vcmask 1043456
        %v491 = vsel %vm489, %v477, 0
        %493 = vmatprep.subr.bf16.mxu0 0
        %494 = vmatpush1.bf16.msra.mxu0 0
        %495 = vmatprep.subr.bf16.mxu0 0
        %496 = vmatpush1.bf16.msra.mxu0 0
        %497 = vmatprep.subr.bf16.mxu0 0
        %498 = vmatpush1.bf16.msra.mxu0 0
        %499 = vmatprep.subr.bf16.mxu0 0
        %500 = vmatpush1.bf16.msra.mxu0 0
        %501 = vmatprep.subr.bf16.mxu0 0
        %502 = vmatpush1.bf16.msra.mxu0 0
        %503 = vmatprep.subr.bf16.mxu0 0
        %504 = vmatpush1.bf16.msra.mxu0 0
        %505 = vmatprep.subr.bf16.mxu0 0
        %506 = vmatpush1.bf16.msra.mxu0 0
        %507 = vmatprep.subr.bf16.mxu0 0
        %508 = vmatpush1.bf16.msra.mxu0 %v491
        %509 = vmatprep.subr.bf16.mxu0 0
        %510 = vmatpush2.bf16.msra.mxu0 0
        %511 = vmatprep.subr.bf16.mxu0 0
        %512 = vmatpush2.bf16.msra.mxu0 0
        %513 = vmatprep.subr.bf16.mxu0 0
        %514 = vmatpush2.bf16.msra.mxu0 0
        %515 = vmatprep.subr.bf16.mxu0 0
        %516 = vmatpush2.bf16.msra.mxu0 0
        %517 = vmatprep.subr.bf16.mxu0 0
        %518 = vmatpush2.bf16.msra.mxu0 0
        %519 = vmatprep.subr.bf16.mxu0 0
        %520 = vmatpush2.bf16.msra.mxu0 0
        %521 = vmatprep.subr.bf16.mxu0 0
        %522 = vmatpush2.bf16.msra.mxu0 0
        %523 = vmatprep.subr.bf16.mxu0 0
        %524 = vmatpush2.bf16.msra.mxu0 0
        %525 = vmatprep.mubr.bf16.mxu0 0
        %526 = vmatmul.mubr.bf16.gmra.mxu0 %v487
        %v527 = vpop.f32.mrf.mxu0
        %v528 = vadd.f32 %v483, %v527
        %v529 = vpop.f32.mrf.mxu0
        %v530 = vpop.f32.mrf.mxu0
        %v531 = vpop.f32.mrf.mxu0
        %532 = vdwg.mxu0
        %v533 = vsel %vm485, %v476, 0.0
        %v534 = vrot.slane %v533, 4
        %v535 = vadd.f32 %v533, %v534
        %v536 = vrot.slane %v535, 2
        %v537 = vadd.f32 %v535, %v536
        %v538 = vrot.slane %v537, 1
        %v539 = vadd.f32 %v537, %v538
        %v540 = vadd.f32 %v478, %v539
        %541 = vst.msk [vmem:[#allocation2] sm:$0x1] %vm460, %v540
        %v542 = vmul.f32 %v528, %v408
        %vm543 = vcmp.lt.f32.partialorder %v542, 4.0
        %v544 = vsel %vm543, 1, 0
        %v545 = vcvt.s32.f32 %v544
        %v546 = vmul.f32 %v408, %v545
        %v547 = vsel %vm372, %v546, 0.0
        %548 = vadd.xlane.f32.xlu0 %v547
        %v549 = vpop.xlane.xlu0 %548
        %v550 = vsel %vm372, %v542, 0.0
        %551 = vadd.xlane.f32.xlu0 %v550
        %v552 = vpop.xlane.xlu0 %551
        %v553 = vmul.f32 %v437, %v549
        %vm554 = vcmp.gt.f32.partialorder %v549, 0.0
        %v555 = vcvt.s32.f32 %v405
        %v556 = vmul.f32 %v555, 4.0
        %v557 = vadd.f32 %v556, %v552
        %v558 = vsel %vm554, %v557, -1.0
        %v559 = vmul.f32 %v528, %v474
        %561 = vrot.lane.b32.xlu0 %v559, 124
        %v562 = vpop.permute.xlu0 %561
        %v564 = vsel %vm372, %v562, 0.0
        %565 = vadd.xlane.f32.xlu0 %v564
        %v566 = vpop.xlane.xlu0 %565
        %v567 = vmul.f32 %v438, %v465
        %vm568 = vcmp.eq.s32.totalorder %v385, 0
        %vm569 = vcmp.eq.s32.totalorder %v385, 1
        %vm570 = vcmp.eq.s32.totalorder %v385, 2
        %vm571 = vcmp.eq.s32.totalorder %v385, 3
        %v572 = vcvt.s32.f32 %v430
        %vm573 = vcmp.eq.s32.totalorder %v385, 4
        %v574 = vsel %vm573, 1, 0
        %vm575 = vcmp.eq.s32.totalorder %v574, 1
        %v576 = vsel %vm575, %v566, 0.0
        %v577 = vsel %vm571, 1, 0
        %vm578 = vcmp.eq.s32.totalorder %v577, 1
        %v579 = vsel %vm578, %v572, %v576
        %v580 = vsel %vm570, 1, 0
        %vm581 = vcmp.eq.s32.totalorder %v580, 1
        %583 = vset.pattern.permute.xlu0 0
        %584 = vperm.xlu0 %583, %v567
        %v585 = vpop.permute.xlu0 %584
        %v587 = vsel %vm581, %v585, %v579
        %v588 = vsel %vm569, 1, 0
        %vm589 = vcmp.eq.s32.totalorder %v588, 1
        %v590 = vsel %vm589, %v558, %v587
        %v591 = vsel %vm568, 1, 0
        %vm592 = vcmp.eq.s32.totalorder %v591, 1
        %v593 = vsel %vm592, %v553, %v590
        %594 = vst.msk [vmem:[%s262] sm:$0xff] %vm485, %v593
        %s595 = sand.u32 %s143, 1
        %s596 = scalar_lea.sflag [#allocation4], %s595
        %s597 = sand.u32 %s143, 1
        %s598 = smul.addr %s597, 8
        %s599 = scalar_lea.vmem [#allocation3], %s598
        %s600 = sand.u32 %s169, 1
        %s601 = scalar_lea.sflag [#allocation6], %s600
        %s602 = sand.u32 %s169, 1
        %s603 = scalar_lea.vmem [#allocation5], %s602
        // Predicated region
        $region41: #{tpu_custom_call.1} parent=35 // pred_check
          %p604 = pneg %p153
        $region42: #{tpu_custom_call.1} parent=35 // pred_check_branch
          %606 = sbr.rel (%p604) target = $region44
        $region43: #{tpu_custom_call.1} parent=35 // pred_region
          %s608 = ssub.s32 128, 128
          %609 = vsyncadd %s596, %s608
          %s610 = sadd.s32 %s28, %s27
          %s611 = smul.addr %s610, 128
          %s612 = scalar_lea.hbm %s4, %s611
          %s614 = sshll.u32 %s599, 4
          %s615 = int_to_ptr.vmem [resolvable:$true] %s614
          %617 = dma.vmem_to_hbm [thread:$0]  %s615, 128, %s612, %s596
        $region44: #{tpu_custom_call.1} parent=35 // pred_fallthru
          _
        // Predicated region
        $region45: #{tpu_custom_call.1} parent=35 // pred_check
          %p618 = pneg %p179
        $region46: #{tpu_custom_call.1} parent=35 // pred_check_branch
          %620 = sbr.rel (%p618) target = $region48
        $region47: #{tpu_custom_call.1} parent=35 // pred_region
          %s622 = ssub.s32 16, 16
          %623 = vsyncadd %s601, %s622
          %s624 = smul.addr %s27, 16
          %s625 = scalar_lea.hbm %s5, %s624
          %s627 = sshll.u32 %s603, 4
          %s628 = int_to_ptr.vmem [resolvable:$true] %s627
          %630 = dma.vmem_to_hbm [thread:$0]  %s628, 16, %s625, %s601
        $region48: #{tpu_custom_call.1} parent=35 // pred_fallthru
          _
      $region36: #{tpu_custom_call.1} parent=5 // pred_fallthru
        _
      %p631 = scmp.le.s32.totalorder 2, %s18
      // Predicated region
      $region49: #{tpu_custom_call.1} parent=5 // pred_check
        %p632 = pneg %p631
      $region50: #{tpu_custom_call.1} parent=5 // pred_check_branch
        %634 = sbr.rel (%p632) target = $region52
      $region51: #{tpu_custom_call.1} parent=5 // pred_region
        %s635 = ssub.s32 %s18, 2
        // Predicated region
        $region53: #{tpu_custom_call.1} parent=51 // pred_check
          %p636 = pneg %p159
        $region54: #{tpu_custom_call.1} parent=51 // pred_check_branch
          %638 = sbr.rel (%p636) target = $region56
        $region55: #{tpu_custom_call.1} parent=51 // pred_region
          %s639 = sand.u32 %s144, 1
          %s640 = scalar_lea.sflag [#allocation4], %s639
          %s641 = sand.u32 %s144, 1
          %s642 = smul.addr %s641, 8
          %s643 = scalar_lea.vmem [#allocation3], %s642
          %644 = dma.done %s640, 128
        $region56: #{tpu_custom_call.1} parent=51 // pred_fallthru
          _
        // Predicated region
        $region57: #{tpu_custom_call.1} parent=51 // pred_check
          %p645 = pneg %p185
        $region58: #{tpu_custom_call.1} parent=51 // pred_check_branch
          %647 = sbr.rel (%p645) target = $region60
        $region59: #{tpu_custom_call.1} parent=51 // pred_region
          %s648 = sand.u32 %s170, 1
          %s649 = scalar_lea.sflag [#allocation6], %s648
          %s650 = sand.u32 %s170, 1
          %s651 = scalar_lea.vmem [#allocation5], %s650
          %652 = dma.done %s649, 16
        $region60: #{tpu_custom_call.1} parent=51 // pred_fallthru
          _
      $region52: #{tpu_custom_call.1} parent=5 // pred_fallthru
        _
    $region6: #{tpu_custom_call.1} parent=1 // loop_footer
      %s22 = sadd.s32 1, %s18
    $region7: #{tpu_custom_call.1} parent=1 // loop_footer_branch
      %17 = sbr.rel target = $region3
    $region8: #{tpu_custom_call.1} parent=1 // loop_exit
      _
    %653 = vsyncpa [#allocation4], 1
    %s654 = scalar_lea.sflag [#allocation4], 1
    %655 = vsyncpa %s654, 1
    %656 = vsyncpa [#allocation6], 1
    %s657 = scalar_lea.sflag [#allocation6], 1
    %658 = vsyncpa %s657, 1

</llo_original>
